<compile_context>
chip_gen: v6e
topology: v6e:2x2x1
jax: 0.10.0
libtpu: 0.0.40
codegen_flags: <defaults>
</compile_context>

<pallas_src>
import functools
import math

import jax
import jax.numpy as jnp
from jax import lax
from jax.experimental import pallas as pl
from jax.experimental.pallas import tpu as pltpu


def _attention_over_heads(qp, kp, vp, bias, oacc_ref, *, num_heads, head_dim,
                          exp_in_bf16):
    """Per-tile attention shared by both kernels.

    qp: (TL1, D) bf16 projected queries (scale already folded into Wq^T)
    kp/vp: (L2, D) bf16 projected keys / values
    bias: (TL1, L2) f32 additive mask bias (already * -10000)
    Writes the (TL1, D) f32 result into oacc_ref.
    """
    for h in range(num_heads):                    # static unroll, H is small
        sl = slice(h * head_dim, (h + 1) * head_dim)
        qh = qp[:, sl]                                                 # (TL1, dh)
        kh = kp[:, sl]                                                 # (L2, dh)
        vh = vp[:, sl]                                                 # (L2, dh)

        # QK^T without an in-kernel transpose: contract last dims of both.
        scores = lax.dot_general(qh, kh, (((1,), (1,)), ((), ())),
                                 preferred_element_type=jnp.float32)   # (TL1, L2)
        scores = scores + bias

        # Numerically-stable softmax; max / bias / sum / renorm stay f32.
        m = jnp.max(scores, axis=-1, keepdims=True)
        shifted = scores - m
        if exp_in_bf16:
            # v6e/v7x only: EUP exp is bf16-capable (~2x f32 rate) and is the
            # saturating slot at dh=8.  Leave False on v5e (no bf16 EUP).
            e = jnp.exp(shifted.astype(jnp.bfloat16)).astype(jnp.float32)
        else:
            e = jnp.exp(shifted)
        denom = jnp.sum(e, axis=-1, keepdims=True)
        probs = e * pl.reciprocal(denom, approx=True)                  # (TL1, L2)

        # TODO(synk): nn.Dropout on attention_probs is identity in eval mode.
        oacc_ref[:, sl] = jnp.dot(probs.astype(jnp.bfloat16), vh,
                                  preferred_element_type=jnp.float32)


def _self_attn_kernel(x_ref, mask_ref, w_ref, out_ref, proj_ref, oacc_ref, *,
                      num_heads, head_dim, seq_len, exp_in_bf16):
    # x_ref:    (1, L, D)    hidden states for this batch (DMA'd once per batch)
    # mask_ref: (1, TL1, L)  attention mask tile (pre -10000 scaling)
    # w_ref:    (D, 3D)      bf16 fused [Wq^T/sqrt(dh) | Wk^T | Wv^T]
    # out_ref:  (1, TL1, D)
    # proj_ref: (Lpad, 3D)   bf16 scratch, persistent across L1 tiles of a batch
    # oacc_ref: (TL1, D)     f32 per-tile output accumulator
    d = num_heads * head_dim
    i = pl.program_id(1)
    tl1 = out_ref.shape[1]

    @pl.when(i == 0)
    def _():
        # One fused projection per batch: (L, D) x (D, 3D), bf16 in / f32 acc.
        x = x_ref[0].astype(jnp.bfloat16)
        proj = jnp.dot(x, w_ref[...], preferred_element_type=jnp.float32)
        proj_ref[pl.ds(0, seq_len), :] = proj.astype(proj_ref.dtype)

    if tl1 >= seq_len:
        row0 = 0                                   # single L1 tile -> static slice
    else:
        row0 = pl.multiple_of(i * tl1, 8)          # tl1 is a multiple of 8 here

    qp = proj_ref[pl.ds(row0, tl1), :][:, 0:d]     # (TL1, D) bf16
    kv = proj_ref[pl.ds(0, seq_len), :]            # (L,  3D) bf16
    kp = kv[:, d:2 * d]
    vp = kv[:, 2 * d:3 * d]

    # Additive mask bias: computed once per (batch, L1-tile), reused by heads.
    # TODO(synk): if the mask is a key-padding mask, ship it as (B, 1, L2)
    # (or int8) and broadcast/expand in-kernel to cut mask DMA.
    bias = mask_ref[0].astype(jnp.float32) * (-10000.0)

    _attention_over_heads(qp, kp, vp, bias, oacc_ref, num_heads=num_heads,
                          head_dim=head_dim, exp_in_bf16=exp_in_bf16)

    # Single lane-dense (TL1, D) store.
    out_ref[0] = oacc_ref[...].astype(out_ref.dtype)


def _cross_attn_kernel(q_ref, k_ref, v_ref, mask_ref, wqt_ref, wkt_ref,
                       wvt_ref, out_ref, kvp_ref, oacc_ref, *,
                       num_heads, head_dim, exp_in_bf16):
    # General (q/k/v distinct) path; K/V projections still once per batch.
    d = num_heads * head_dim
    i = pl.program_id(1)

    @pl.when(i == 0)
    def _():
        kp = jnp.dot(k_ref[0].astype(jnp.bfloat16), wkt_ref[...],
                     preferred_element_type=jnp.float32)
        vp = jnp.dot(v_ref[0].astype(jnp.bfloat16), wvt_ref[...],
                     preferred_element_type=jnp.float32)
        kvp_ref[:, 0:d] = kp.astype(kvp_ref.dtype)
        kvp_ref[:, d:2 * d] = vp.astype(kvp_ref.dtype)

    # Query projection for this L1 tile (Wq^T already carries 1/sqrt(dh)).
    qp = jnp.dot(q_ref[0].astype(jnp.bfloat16), wqt_ref[...],
                 preferred_element_type=jnp.float32).astype(jnp.bfloat16)

    kvp = kvp_ref[...]
    kp = kvp[:, 0:d]
    vp = kvp[:, d:2 * d]

    bias = mask_ref[0].astype(jnp.float32) * (-10000.0)

    _attention_over_heads(qp, kp, vp, bias, oacc_ref, num_heads=num_heads,
                          head_dim=head_dim, exp_in_bf16=exp_in_bf16)
    out_ref[0] = oacc_ref[...].astype(out_ref.dtype)


def _pick_l1_tile(l1):
    # Bigger tiles amortize the ~0.35us per-grid-step overhead; 512 keeps the
    # q/mask/out working set modest.  Full L1 when it already fits.
    # TODO(synk): for very long L2, add an L2 grid axis with an online-softmax
    # (flash-style) accumulator; on v7x (64 MiB VMEM) trigger it at roughly
    # half the L2 threshold tolerable on v5e/v6e.
    return l1 if l1 <= 512 else 512


def multi_head_self_attention(q, k, v, attention_mask, wq, wk, wv, num_heads,
                              *, exp_in_bf16=False):
    """Pallas forward of MultiHeadSelfAttention. Returns (hidden (B,L1,D), None)."""
    B, L1, D = q.shape
    _, L2, _ = k.shape
    assert D % num_heads == 0
    assert v.shape == k.shape and attention_mask.shape == (B, L1, L2)
    dh = D // num_heads
    scale = 1.0 / math.sqrt(dh)

    tl1 = _pick_l1_tile(L1)
    n_l1 = pl.cdiv(L1, tl1)

    common = dict(
        out_shape=jax.ShapeDtypeStruct((B, L1, D), q.dtype),
        compiler_params=pltpu.CompilerParams(
            # Batch axis "parallel" (v7x megacore can split B); the L1-tile
            # axis must be "arbitrary" because the per-batch projection
            # scratch is carried across L1 tiles.
            dimension_semantics=("parallel", "arbitrary"),
            vmem_limit_bytes=32 * 1024 * 1024),
    )

    if q is k and k is v:
        # ---- Self-attention fast path: one input stream + fused (D,3D) weight.
        w_fused = jnp.concatenate(
            [jnp.transpose(wq) * scale, jnp.transpose(wk), jnp.transpose(wv)],
            axis=1).astype(jnp.bfloat16)                               # (D, 3D)
        l_pad = n_l1 * tl1
        kernel = functools.partial(_self_attn_kernel, num_heads=num_heads,
                                   head_dim=dh, seq_len=L1,
                                   exp_in_bf16=exp_in_bf16)
        hidden = pl.pallas_call(
            kernel,
            grid_spec=pltpu.PrefetchScalarGridSpec(
                num_scalar_prefetch=0,
                grid=(B, n_l1),
                in_specs=[
                    pl.BlockSpec((1, L1, D), lambda b, i: (b, 0, 0)),    # x (once/batch)
                    pl.BlockSpec((1, tl1, L2), lambda b, i: (b, i, 0)),  # mask tile
                    pl.BlockSpec((D, 3 * D), lambda b, i: (0, 0)),       # fused W
                ],
                out_specs=pl.BlockSpec((1, tl1, D), lambda b, i: (b, i, 0)),
                scratch_shapes=[
                    pltpu.VMEM((l_pad, 3 * D), jnp.bfloat16),   # per-batch projections
                    pltpu.VMEM((tl1, D), jnp.float32),          # output accumulator
                ]),
            **common,
        )(q, attention_mask, w_fused)
        # TODO(synk): get_attention_mat=True (returning (B,H,L1,L2) probs) is
        # not materialized; would need a second kernel output.
        return hidden, None

    # ---- General path (q / k / v distinct, e.g. cross-attention style call).
    wqt = (jnp.transpose(wq) * scale).astype(jnp.bfloat16)
    wkt = jnp.transpose(wk).astype(jnp.bfloat16)
    wvt = jnp.transpose(wv).astype(jnp.bfloat16)
    kernel = functools.partial(_cross_attn_kernel, num_heads=num_heads,
                               head_dim=dh, exp_in_bf16=exp_in_bf16)
    hidden = pl.pallas_call(
        kernel,
        grid_spec=pltpu.PrefetchScalarGridSpec(
            num_scalar_prefetch=0,
            grid=(B, n_l1),
            in_specs=[
                pl.BlockSpec((1, tl1, D), lambda b, i: (b, i, 0)),   # q tile
                pl.BlockSpec((1, L2, D), lambda b, i: (b, 0, 0)),    # k (once/batch)
                pl.BlockSpec((1, L2, D), lambda b, i: (b, 0, 0)),    # v (once/batch)
                pl.BlockSpec((1, tl1, L2), lambda b, i: (b, i, 0)),  # mask tile
                pl.BlockSpec((D, D), lambda b, i: (0, 0)),           # Wq^T (scaled)
                pl.BlockSpec((D, D), lambda b, i: (0, 0)),           # Wk^T
                pl.BlockSpec((D, D), lambda b, i: (0, 0)),           # Wv^T
            ],
            out_specs=pl.BlockSpec((1, tl1, D), lambda b, i: (b, i, 0)),
            scratch_shapes=[
                pltpu.VMEM((L2, 2 * D), jnp.bfloat16),   # kp|vp, once per batch
                pltpu.VMEM((tl1, D), jnp.float32),       # output accumulator
            ]),
        **common,
    )(q, k, v, attention_mask, wqt, wkt, wvt)
    return hidden, None


def _reference(q, k, v, attention_mask, wq, wk, wv, num_heads):
    """Pure-JAX replica of the PyTorch forward (eval mode) for verification."""
    B, L1, D = q.shape
    L2 = k.shape[1]
    dh = D // num_heads
    mask = attention_mask * -10000.0
    Q = q @ wq.T
    K = k @ wk.T
    V = v @ wv.T

    def heads(x, L):
        return x.reshape(B, L, num_heads, dh).transpose(0, 2, 1, 3)

    Qh, Kh, Vh = heads(Q, L1), heads(K, L2), heads(V, L2)
    att = jnp.einsum("bhqd,bhkd->bhqk", Qh, Kh) / math.sqrt(dh)
    att = att + mask[:, None]
    probs = jax.nn.softmax(att, axis=-1)
    out = jnp.einsum("bhqk,bhkd->bhqd", probs, Vh)
    return out.transpose(0, 2, 1, 3).reshape(B, L1, D)


if __name__ == "__main__":
    # Config: embedding_dim=32, num_attention_heads=4, hidden_dropout=0.1
    # (dropout is identity in eval mode).
    B, L, D, H = 2, 8, 32, 4
    key = jax.random.PRNGKey(0)
    kx, kmask, kwq, kwk, kwv, kq2, kk2, kv2, kmask2 = jax.random.split(key, 9)

    bound = 1.0 / math.sqrt(D)
    wq = jax.random.uniform(kwq, (D, D), minval=-bound, maxval=bound, dtype=jnp.float32)
    wk = jax.random.uniform(kwk, (D, D), minval=-bound, maxval=bound, dtype=jnp.float32)
    wv = jax.random.uniform(kwv, (D, D), minval=-bound, maxval=bound, dtype=jnp.float32)

    # --- Self-attention (q = k = v): exercises the fused fast-path kernel.
    x = jax.random.normal(kx, (B, L, D), dtype=jnp.float32)
    # mask: 1.0 where blocked, 0.0 where allowed (module scales by -10000).
    mask = (jax.random.uniform(kmask, (B, L, L)) > 0.8).astype(jnp.float32)
    hidden, attn = multi_head_self_attention(x, x, x, mask, wq, wk, wv, H)
    hidden = jax.block_until_ready(hidden)
    assert hidden.shape == (B, L, D) and attn is None
    ref = _reference(x, x, x, mask, wq, wk, wv, H)
    err = float(jnp.max(jnp.abs(hidden - ref)))
    # bf16 matmul operands + approx (EUP) reciprocal in softmax -> looser tol.
    assert jnp.allclose(hidden, ref, atol=3e-2, rtol=3e-2), err

    # --- Distinct q / k / v (the module also allows this): general kernel.
    L2 = 16
    q2 = jax.random.normal(kq2, (B, L, D), dtype=jnp.float32)
    k2 = jax.random.normal(kk2, (B, L2, D), dtype=jnp.float32)
    v2 = jax.random.normal(kv2, (B, L2, D), dtype=jnp.float32)
    mask2 = (jax.random.uniform(kmask2, (B, L, L2)) > 0.8).astype(jnp.float32)
    hidden2, _ = multi_head_self_attention(q2, k2, v2, mask2, wq, wk, wv, H)
    hidden2 = jax.block_until_ready(hidden2)
    ref2 = _reference(q2, k2, v2, mask2, wq, wk, wv, H)
    err2 = float(jnp.max(jnp.abs(hidden2 - ref2)))
    assert jnp.allclose(hidden2, ref2, atol=3e-2, rtol=3e-2), err2

    print("KERNEL_OK")
</pallas_src>

<mosaic_0001>
module attributes {stable_mosaic.version = 11 : i64} {
  func.func @_self_attn_kernel(%arg0: i32, %arg1: i32, %arg2: memref<1x8x32xf32, #tpu.memory_space<vmem>>, %arg3: memref<1x8x8xf32, #tpu.memory_space<vmem>>, %arg4: memref<32x96xbf16, #tpu.memory_space<vmem>>, %arg5: memref<1x8x32xf32, #tpu.memory_space<vmem>>, %arg6: memref<8x96xbf16, #tpu.memory_space<vmem>>, %arg7: memref<8x32xf32, #tpu.memory_space<vmem>>) attributes {dimension_semantics = [#tpu.dimension_semantics<parallel>, #tpu.dimension_semantics<arbitrary>], iteration_bounds = array<i64: 2, 1>, scalar_prefetch = 0 : i64, scratch_operands = 2 : i64, tpu.core_type = #tpu.core_type<tc>, window_params = [{transform_indices = @transform_0, window_bounds = array<i64: 1, 8, 32>}, {transform_indices = @transform_1, window_bounds = array<i64: 1, 8, 8>}, {pipeline_mode = #tpu.pipeline_mode<synchronous>, transform_indices = @transform_2, window_bounds = array<i64: 32, 96>}, {transform_indices = @transform_3, window_bounds = array<i64: 1, 8, 32>}]} {
    %c0_i32 = arith.constant 0 : i32
    %0 = arith.cmpi eq, %arg1, %c0_i32 : i32
    %1 = arith.extui %0 : i1 to i32
    %c0_i32_0 = arith.constant 0 : i32
    %2 = arith.cmpi ne, %1, %c0_i32_0 : i32
    scf.if %2 {
      %c0_33 = arith.constant 0 : index
      %c0_34 = arith.constant 0 : index
      %c0_35 = arith.constant 0 : index
      %88 = vector.load %arg2[%c0_33, %c0_34, %c0_35] : memref<1x8x32xf32, #tpu.memory_space<vmem>>, vector<1x8x32xf32>
      %89 = vector.shape_cast %88 : vector<1x8x32xf32> to vector<8x32xf32>
      %90 = arith.truncf %89 : vector<8x32xf32> to vector<8x32xbf16>
      %c0_36 = arith.constant 0 : index
      %c0_37 = arith.constant 0 : index
      %91 = vector.load %arg4[%c0_36, %c0_37] : memref<32x96xbf16, #tpu.memory_space<vmem>>, vector<32x96xbf16>
      %cst_38 = arith.constant dense<0.000000e+00> : vector<8x96xf32>
      %92 = tpu.matmul %90, %91, %cst_38 {dimension_numbers = #tpu.dot_dimension_numbers<[1], [0], [0], [1], [0, 0, 1, 1], [], []>} : vector<8x32xbf16>, vector<32x96xbf16>, vector<8x96xf32> -> vector<8x96xf32>
      %93 = arith.truncf %92 : vector<8x96xf32> to vector<8x96xbf16>
      %c0_39 = arith.constant 0 : index
      %c0_40 = arith.constant 0 : index
      %94 = vector.load %arg6[%c0_39, %c0_40] : memref<8x96xbf16, #tpu.memory_space<vmem>>, vector<8x96xbf16>
      tpu.vector_store %arg6[%c0_39, %c0_40], %93 {strides = array<i32>} : memref<8x96xbf16, #tpu.memory_space<vmem>>, vector<8x96xbf16>,
    } else {
    }
    %c0 = arith.constant 0 : index
    %c0_1 = arith.constant 0 : index
    %3 = vector.load %arg6[%c0, %c0_1] : memref<8x96xbf16, #tpu.memory_space<vmem>>, vector<8x96xbf16>
    %4 = vector.extract_strided_slice %3 {offsets = [0, 0], sizes = [8, 32], strides = [1, 1]} : vector<8x96xbf16> to vector<8x32xbf16>
    %c0_2 = arith.constant 0 : index
    %c0_3 = arith.constant 0 : index
    %5 = vector.load %arg6[%c0_2, %c0_3] : memref<8x96xbf16, #tpu.memory_space<vmem>>, vector<8x96xbf16>
    %6 = vector.extract_strided_slice %5 {offsets = [0, 32], sizes = [8, 32], strides = [1, 1]} : vector<8x96xbf16> to vector<8x32xbf16>
    %7 = vector.extract_strided_slice %5 {offsets = [0, 64], sizes = [8, 32], strides = [1, 1]} : vector<8x96xbf16> to vector<8x32xbf16>
    %c0_4 = arith.constant 0 : index
    %c0_5 = arith.constant 0 : index
    %c0_6 = arith.constant 0 : index
    %8 = vector.load %arg3[%c0_4, %c0_5, %c0_6] : memref<1x8x8xf32, #tpu.memory_space<vmem>>, vector<1x8x8xf32>
    %9 = vector.shape_cast %8 : vector<1x8x8xf32> to vector<8x8xf32>
    %cst = arith.constant -1.000000e+04 : f32
    %10 = vector.broadcast %cst : f32 to vector<8x8xf32>
    %11 = arith.mulf %9, %10 : vector<8x8xf32>
    %12 = vector.extract_strided_slice %4 {offsets = [0, 0], sizes = [8, 8], strides = [1, 1]} : vector<8x32xbf16> to vector<8x8xbf16>
    %13 = vector.extract_strided_slice %6 {offsets = [0, 0], sizes = [8, 8], strides = [1, 1]} : vector<8x32xbf16> to vector<8x8xbf16>
    %14 = vector.extract_strided_slice %7 {offsets = [0, 0], sizes = [8, 8], strides = [1, 1]} : vector<8x32xbf16> to vector<8x8xbf16>
    %cst_7 = arith.constant dense<0.000000e+00> : vector<8x8xf32>
    %15 = tpu.matmul %12, %13, %cst_7 {dimension_numbers = #tpu.dot_dimension_numbers<[1], [1], [0], [0], [0, 0, 1, 0], [], []>} : vector<8x8xbf16>, vector<8x8xbf16>, vector<8x8xf32> -> vector<8x8xf32>
    %16 = arith.addf %15, %11 : vector<8x8xf32>
    %cst_8 = arith.constant dense<0xFF800000> : vector<8xf32>
    %17 = vector.multi_reduction <maximumf>, %16, %cst_8 [1] : vector<8x8xf32> to vector<8xf32>
    %18 = vector.shape_cast %17 : vector<8xf32> to vector<8x1xf32>
    %19 = vector.broadcast %18 : vector<8x1xf32> to vector<8x8xf32>
    %20 = arith.subf %16, %19 : vector<8x8xf32>
    %21 = math.exp %20 : vector<8x8xf32>
    %cst_9 = arith.constant dense<0.000000e+00> : vector<8xf32>
    %22 = vector.multi_reduction <add>, %21, %cst_9 [1] : vector<8x8xf32> to vector<8xf32>
    %23 = vector.shape_cast %22 : vector<8xf32> to vector<8x1xf32>
    %24 = tpu.reciprocal %23 {approx = true} : vector<8x1xf32> -> vector<8x1xf32>
    %25 = vector.broadcast %24 : vector<8x1xf32> to vector<8x8xf32>
    %26 = arith.mulf %21, %25 : vector<8x8xf32>
    %27 = arith.truncf %26 : vector<8x8xf32> to vector<8x8xbf16>
    %cst_10 = arith.constant dense<0.000000e+00> : vector<8x8xf32>
    %28 = tpu.matmul %27, %14, %cst_10 {dimension_numbers = #tpu.dot_dimension_numbers<[1], [0], [0], [1], [0, 0, 1, 1], [], []>} : vector<8x8xbf16>, vector<8x8xbf16>, vector<8x8xf32> -> vector<8x8xf32>
    %c0_11 = arith.constant 0 : index
    %c0_12 = arith.constant 0 : index
    %29 = vector.load %arg7[%c0_11, %c0_12] : memref<8x32xf32, #tpu.memory_space<vmem>>, vector<8x8xf32>
    tpu.vector_store %arg7[%c0_11, %c0_12], %28 {strides = array<i32>} : memref<8x32xf32, #tpu.memory_space<vmem>>, vector<8x8xf32>,
    %30 = vector.extract_strided_slice %4 {offsets = [0, 8], sizes = [8, 8], strides = [1, 1]} : vector<8x32xbf16> to vector<8x8xbf16>
    %31 = vector.extract_strided_slice %6 {offsets = [0, 8], sizes = [8, 8], strides = [1, 1]} : vector<8x32xbf16> to vector<8x8xbf16>
    %32 = vector.extract_strided_slice %7 {offsets = [0, 8], sizes = [8, 8], strides = [1, 1]} : vector<8x32xbf16> to vector<8x8xbf16>
    %cst_13 = arith.constant dense<0.000000e+00> : vector<8x8xf32>
    %33 = tpu.matmul %30, %31, %cst_13 {dimension_numbers = #tpu.dot_dimension_numbers<[1], [1], [0], [0], [0, 0, 1, 0], [], []>} : vector<8x8xbf16>, vector<8x8xbf16>, vector<8x8xf32> -> vector<8x8xf32>
    %34 = arith.addf %33, %11 : vector<8x8xf32>
    %cst_14 = arith.constant dense<0xFF800000> : vector<8xf32>
    %35 = vector.multi_reduction <maximumf>, %34, %cst_14 [1] : vector<8x8xf32> to vector<8xf32>
    %36 = vector.shape_cast %35 : vector<8xf32> to vector<8x1xf32>
    %37 = vector.broadcast %36 : vector<8x1xf32> to vector<8x8xf32>
    %38 = arith.subf %34, %37 : vector<8x8xf32>
    %39 = math.exp %38 : vector<8x8xf32>
    %cst_15 = arith.constant dense<0.000000e+00> : vector<8xf32>
    %40 = vector.multi_reduction <add>, %39, %cst_15 [1] : vector<8x8xf32> to vector<8xf32>
    %41 = vector.shape_cast %40 : vector<8xf32> to vector<8x1xf32>
    %42 = tpu.reciprocal %41 {approx = true} : vector<8x1xf32> -> vector<8x1xf32>
    %43 = vector.broadcast %42 : vector<8x1xf32> to vector<8x8xf32>
    %44 = arith.mulf %39, %43 : vector<8x8xf32>
    %45 = arith.truncf %44 : vector<8x8xf32> to vector<8x8xbf16>
    %cst_16 = arith.constant dense<0.000000e+00> : vector<8x8xf32>
    %46 = tpu.matmul %45, %32, %cst_16 {dimension_numbers = #tpu.dot_dimension_numbers<[1], [0], [0], [1], [0, 0, 1, 1], [], []>} : vector<8x8xbf16>, vector<8x8xbf16>, vector<8x8xf32> -> vector<8x8xf32>
    %c0_17 = arith.constant 0 : index
    %c8 = arith.constant 8 : index
    %47 = vector.load %arg7[%c0_17, %c8] : memref<8x32xf32, #tpu.memory_space<vmem>>, vector<8x8xf32>
    tpu.vector_store %arg7[%c0_17, %c8], %46 {strides = array<i32>} : memref<8x32xf32, #tpu.memory_space<vmem>>, vector<8x8xf32>,
    %48 = vector.extract_strided_slice %4 {offsets = [0, 16], sizes = [8, 8], strides = [1, 1]} : vector<8x32xbf16> to vector<8x8xbf16>
    %49 = vector.extract_strided_slice %6 {offsets = [0, 16], sizes = [8, 8], strides = [1, 1]} : vector<8x32xbf16> to vector<8x8xbf16>
    %50 = vector.extract_strided_slice %7 {offsets = [0, 16], sizes = [8, 8], strides = [1, 1]} : vector<8x32xbf16> to vector<8x8xbf16>
    %cst_18 = arith.constant dense<0.000000e+00> : vector<8x8xf32>
    %51 = tpu.matmul %48, %49, %cst_18 {dimension_numbers = #tpu.dot_dimension_numbers<[1], [1], [0], [0], [0, 0, 1, 0], [], []>} : vector<8x8xbf16>, vector<8x8xbf16>, vector<8x8xf32> -> vector<8x8xf32>
    %52 = arith.addf %51, %11 : vector<8x8xf32>
    %cst_19 = arith.constant dense<0xFF800000> : vector<8xf32>
    %53 = vector.multi_reduction <maximumf>, %52, %cst_19 [1] : vector<8x8xf32> to vector<8xf32>
    %54 = vector.shape_cast %53 : vector<8xf32> to vector<8x1xf32>
    %55 = vector.broadcast %54 : vector<8x1xf32> to vector<8x8xf32>
    %56 = arith.subf %52, %55 : vector<8x8xf32>
    %57 = math.exp %56 : vector<8x8xf32>
    %cst_20 = arith.constant dense<0.000000e+00> : vector<8xf32>
    %58 = vector.multi_reduction <add>, %57, %cst_20 [1] : vector<8x8xf32> to vector<8xf32>
    %59 = vector.shape_cast %58 : vector<8xf32> to vector<8x1xf32>
    %60 = tpu.reciprocal %59 {approx = true} : vector<8x1xf32> -> vector<8x1xf32>
    %61 = vector.broadcast %60 : vector<8x1xf32> to vector<8x8xf32>
    %62 = arith.mulf %57, %61 : vector<8x8xf32>
    %63 = arith.truncf %62 : vector<8x8xf32> to vector<8x8xbf16>
    %cst_21 = arith.constant dense<0.000000e+00> : vector<8x8xf32>
    %64 = tpu.matmul %63, %50, %cst_21 {dimension_numbers = #tpu.dot_dimension_numbers<[1], [0], [0], [1], [0, 0, 1, 1], [], []>} : vector<8x8xbf16>, vector<8x8xbf16>, vector<8x8xf32> -> vector<8x8xf32>
    %c0_22 = arith.constant 0 : index
    %c16 = arith.constant 16 : index
    %65 = vector.load %arg7[%c0_22, %c16] : memref<8x32xf32, #tpu.memory_space<vmem>>, vector<8x8xf32>
    tpu.vector_store %arg7[%c0_22, %c16], %64 {strides = array<i32>} : memref<8x32xf32, #tpu.memory_space<vmem>>, vector<8x8xf32>,
    %66 = vector.extract_strided_slice %4 {offsets = [0, 24], sizes = [8, 8], strides = [1, 1]} : vector<8x32xbf16> to vector<8x8xbf16>
    %67 = vector.extract_strided_slice %6 {offsets = [0, 24], sizes = [8, 8], strides = [1, 1]} : vector<8x32xbf16> to vector<8x8xbf16>
    %68 = vector.extract_strided_slice %7 {offsets = [0, 24], sizes = [8, 8], strides = [1, 1]} : vector<8x32xbf16> to vector<8x8xbf16>
    %cst_23 = arith.constant dense<0.000000e+00> : vector<8x8xf32>
    %69 = tpu.matmul %66, %67, %cst_23 {dimension_numbers = #tpu.dot_dimension_numbers<[1], [1], [0], [0], [0, 0, 1, 0], [], []>} : vector<8x8xbf16>, vector<8x8xbf16>, vector<8x8xf32> -> vector<8x8xf32>
    %70 = arith.addf %69, %11 : vector<8x8xf32>
    %cst_24 = arith.constant dense<0xFF800000> : vector<8xf32>
    %71 = vector.multi_reduction <maximumf>, %70, %cst_24 [1] : vector<8x8xf32> to vector<8xf32>
    %72 = vector.shape_cast %71 : vector<8xf32> to vector<8x1xf32>
    %73 = vector.broadcast %72 : vector<8x1xf32> to vector<8x8xf32>
    %74 = arith.subf %70, %73 : vector<8x8xf32>
    %75 = math.exp %74 : vector<8x8xf32>
    %cst_25 = arith.constant dense<0.000000e+00> : vector<8xf32>
    %76 = vector.multi_reduction <add>, %75, %cst_25 [1] : vector<8x8xf32> to vector<8xf32>
    %77 = vector.shape_cast %76 : vector<8xf32> to vector<8x1xf32>
    %78 = tpu.reciprocal %77 {approx = true} : vector<8x1xf32> -> vector<8x1xf32>
    %79 = vector.broadcast %78 : vector<8x1xf32> to vector<8x8xf32>
    %80 = arith.mulf %75, %79 : vector<8x8xf32>
    %81 = arith.truncf %80 : vector<8x8xf32> to vector<8x8xbf16>
    %cst_26 = arith.constant dense<0.000000e+00> : vector<8x8xf32>
    %82 = tpu.matmul %81, %68, %cst_26 {dimension_numbers = #tpu.dot_dimension_numbers<[1], [0], [0], [1], [0, 0, 1, 1], [], []>} : vector<8x8xbf16>, vector<8x8xbf16>, vector<8x8xf32> -> vector<8x8xf32>
    %c0_27 = arith.constant 0 : index
    %c24 = arith.constant 24 : index
    %83 = vector.load %arg7[%c0_27, %c24] : memref<8x32xf32, #tpu.memory_space<vmem>>, vector<8x8xf32>
    tpu.vector_store %arg7[%c0_27, %c24], %82 {strides = array<i32>} : memref<8x32xf32, #tpu.memory_space<vmem>>, vector<8x8xf32>,
    %c0_28 = arith.constant 0 : index
    %c0_29 = arith.constant 0 : index
    %84 = vector.load %arg7[%c0_28, %c0_29] : memref<8x32xf32, #tpu.memory_space<vmem>>, vector<8x32xf32>
    %c0_30 = arith.constant 0 : index
    %c0_31 = arith.constant 0 : index
    %c0_32 = arith.constant 0 : index
    %85 = vector.load %arg5[%c0_30, %c0_31, %c0_32] : memref<1x8x32xf32, #tpu.memory_space<vmem>>, vector<1x8x32xf32>
    %86 = vector.shape_cast %85 : vector<1x8x32xf32> to vector<8x32xf32>
    %87 = vector.shape_cast %84 : vector<8x32xf32> to vector<1x8x32xf32>
    tpu.vector_store %arg5[%c0_30, %c0_31, %c0_32], %87 {strides = array<i32>} : memref<1x8x32xf32, #tpu.memory_space<vmem>>, vector<1x8x32xf32>,
    return
  }
  func.func @transform_0(%arg0: i32, %arg1: i32) -> (i32, i32, i32) {
    %c0_i32 = arith.constant 0 : i32
    %c0_i32_0 = arith.constant 0 : i32
    %c0_i32_1 = arith.constant 0 : i32
    return %arg0, %c0_i32, %c0_i32_0 : i32, i32, i32
  }
  func.func @transform_1(%arg0: i32, %arg1: i32) -> (i32, i32, i32) {
    %c0_i32 = arith.constant 0 : i32
    %c0_i32_0 = arith.constant 0 : i32
    return %arg0, %arg1, %c0_i32 : i32, i32, i32
  }
  func.func @transform_2(%arg0: i32, %arg1: i32) -> (i32, i32) {
    %c0_i32 = arith.constant 0 : i32
    %c0_i32_0 = arith.constant 0 : i32
    %c0_i32_1 = arith.constant 0 : i32
    return %c0_i32, %c0_i32_0 : i32, i32
  }
  func.func @transform_3(%arg0: i32, %arg1: i32) -> (i32, i32, i32) {
    %c0_i32 = arith.constant 0 : i32
    %c0_i32_0 = arith.constant 0 : i32
    return %arg0, %arg1, %c0_i32 : i32, i32, i32
  }
}

</mosaic_0001>

<llo_original>
// kernel: tpu_custom_call.1
$region0: #{tpu_custom_call.1}
  #allocation0 [shape = 'u32[]', space=smem, size = 0x4, offset = 0x4, fixed_abs, tag = 'smem constant byte address 0x4 - core index']
  #allocation1 [shape = 'u32[144,128]{1,0:T(1,128)}', space=vmem, size = 0x12000, scoped, tag = 'internal scratch']
  #allocation2 [shape = 'bf16[8,96]{1,0:T(8,128)(2,1)}', space=vmem, size = 0x800, scoped, tag = 'scratch operand']
  #allocation3 [shape = 'f32[8,32]{1,0:T(8,128)}', space=vmem, size = 0x1000, scoped, tag = 'scratch operand']
  %s0 = inlined_call_operand.hbm [shape: f32[2,8,32], index: 0, kind: input, shape index: {}]
  %s1 = inlined_call_operand.hbm [shape: f32[2,8,8], index: 1, kind: input, shape index: {}]
  %s2 = inlined_call_operand.hbm [shape: bf16[32,96], index: 2, kind: input, shape index: {}]
  %s3 = inlined_call_operand.hbm [shape: f32[2,8,32], index: 3, kind: output, shape index: {}]
  %s4 = sld [smem:[#allocation0]]
  $region61: #{tpu_custom_call.1} parent=0
    _
  %s6 = ssub.s32 1, %s4
  %s7 = scalar_select 0, %s6, %s4
  $region1: #{tpu_custom_call.1} parent=0
    #allocation4 [shape = 'u8[8192]{0}', space=vmem, size = 0x2000, scoped, tag = 'input window, operand 0']
    #allocation5 [shape = 's32[2]{0}', space=sflag, size = 0x8, scoped, tag = 'scoped memory for tpu_custom_call.1']
    #allocation6 [shape = 's32[2]{0}', space=sflag, size = 0x8, scoped, tag = 'scoped memory for tpu_custom_call.1']
    #allocation7 [shape = 'u8[8192]{0}', space=vmem, size = 0x2000, scoped, tag = 'input window, operand 1']
    #allocation8 [shape = 's32[2]{0}', space=sflag, size = 0x8, scoped, tag = 'scoped memory for tpu_custom_call.1']
    #allocation9 [shape = 'u8[8192]{0}', space=vmem, size = 0x2000, scoped, tag = 'input window, operand 2, single buffered']
    #allocation10 [shape = 'u8[8192]{0}', space=vmem, size = 0x2000, scoped, tag = 'output window, operand 0']
    %8 = vsyncpa [#allocation5], 0
    %s9 = scalar_lea.sflag [#allocation5], 1
    %10 = vsyncpa %s9, 0
    %11 = vsyncpa [#allocation8], 0
    %s12 = scalar_lea.sflag [#allocation8], 1
    %13 = vsyncpa %s12, 0
    %14 = vsyncpa [#allocation6], 0
    %s15 = scalar_lea.sflag [#allocation6], 1
    %16 = vsyncpa %s15, 0
    loop: start=0, step=1, limit=4
    $region2: #{tpu_custom_call.1} parent=1 // loop_pre_header
      _
    $region3: #{tpu_custom_call.1} parent=1 // loop_header
      %s18 = sphi 0, %s22
      %p19 = scmp.ge.s32.totalorder %s18, 4
      %s25 = sphi 0, %s37
      %s26 = sphi 0, %s33
      %s27 = sphi 0, %s25
      %s28 = sphi 0, %s26
      %s29 = sphi 0, %s27
      %s30 = sphi 0, %s28
      %s40 = sphi 0, %s42
      %s43 = sphi 0, %s40
      %s44 = sphi 0, %s43
      %s60 = sphi 0, %s44
      %s68 = sphi 0, %s70
      %s71 = sphi 0, %s68
      %s72 = sphi 0, %s71
      %s88 = sphi 0, %s72
      %s92 = sphi 0, %s92
      %s94 = sphi 0, %s92
      %s95 = sphi 0, %s94
      %s109 = sphi 0, %s95
      %s117 = sphi 0, %s119
      %s120 = sphi 0, %s117
      %s121 = sphi 0, %s120
      %s137 = sphi 0, %s121
    $region4: #{tpu_custom_call.1} parent=1 // loop_header_branch
      %21 = sbr.rel (%p19) target = $region8
    $region5: #{tpu_custom_call.1} parent=1 // loop_body
      %s23 = ssub.s32 %s18, 1
      %s24 = ssub.s32 %s18, 2
      %s31 = sadd.s32 1, %s26
      %p32 = scmp.ge.s32.totalorder %s31, 1
      %s33 = scalar_select %p32, 0, %s31
      %s34 = sadd.s32 1, %s25
      %s35 = scalar_select %p32, %s34, %s25
      %p36 = scmp.ge.s32.totalorder %s35, 2
      %s37 = scalar_select %p36, 0, %s35
      %s38 = ssub.s32 %s25, %s37
      %p39 = scmp.eq.s32.totalorder %s38, 0
      %s41 = sadd.s32 %s40, 1
      %s42 = scalar_select %p39, %s40, %s41
      %p45 = pneg %p39
      %p46 = scmp.eq.s32.totalorder %s18, 1
      %p47 = por %p45, %p46
      %p48 = scmp.ne.s32.totalorder %s40, %s43
      %p49 = scmp.eq.s32.totalorder %s18, 0
      %p50 = por %p48, %p49
      %p51 = scmp.ne.s32.totalorder %s40, %s43
      %p52 = scmp.eq.s32.totalorder %s23, 1
      %p53 = por %p51, %p52
      %p54 = scmp.ne.s32.totalorder %s43, %s44
      %p55 = scmp.eq.s32.totalorder %s23, 0
      %p56 = por %p54, %p55
      %p57 = scmp.ne.s32.totalorder %s43, %s44
      %p58 = scmp.eq.s32.totalorder %s24, 1
      %p59 = por %p57, %p58
      %p61 = scmp.ne.s32.totalorder %s44, %s60
      %p62 = scmp.eq.s32.totalorder %s24, 0
      %p63 = por %p61, %p62
      %s64 = ssub.s32 %s25, %s37
      %s65 = ssub.s32 %s26, %s33
      %s66 = sor.u32 %s64, %s65
      %p67 = scmp.eq.s32.totalorder %s66, 0
      %s69 = sadd.s32 %s68, 1
      %s70 = scalar_select %p67, %s68, %s69
      %p73 = pneg %p67
      %p74 = scmp.eq.s32.totalorder %s18, 1
      %p75 = por %p73, %p74
      %p76 = scmp.ne.s32.totalorder %s68, %s71
      %p77 = scmp.eq.s32.totalorder %s18, 0
      %p78 = por %p76, %p77
      %p79 = scmp.ne.s32.totalorder %s68, %s71
      %p80 = scmp.eq.s32.totalorder %s23, 1
      %p81 = por %p79, %p80
      %p82 = scmp.ne.s32.totalorder %s71, %s72
      %p83 = scmp.eq.s32.totalorder %s23, 0
      %p84 = por %p82, %p83
      %p85 = scmp.ne.s32.totalorder %s71, %s72
      %p86 = scmp.eq.s32.totalorder %s24, 1
      %p87 = por %p85, %p86
      %p89 = scmp.ne.s32.totalorder %s72, %s88
      %p90 = scmp.eq.s32.totalorder %s24, 0
      %p91 = por %p89, %p90
      %s93 = sadd.s32 %s92, 1
      %p96 = scmp.eq.s32.totalorder %s18, 1
      %p97 = scmp.ne.s32.totalorder %s92, %s94
      %p98 = scmp.eq.s32.totalorder %s18, 0
      %p99 = por %p97, %p98
      %p100 = scmp.ne.s32.totalorder %s92, %s94
      %p101 = scmp.eq.s32.totalorder %s23, 1
      %p102 = por %p100, %p101
      %p103 = scmp.ne.s32.totalorder %s94, %s95
      %p104 = scmp.eq.s32.totalorder %s23, 0
      %p105 = por %p103, %p104
      %p106 = scmp.ne.s32.totalorder %s94, %s95
      %p107 = scmp.eq.s32.totalorder %s24, 1
      %p108 = por %p106, %p107
      %p110 = scmp.ne.s32.totalorder %s95, %s109
      %p111 = scmp.eq.s32.totalorder %s24, 0
      %p112 = por %p110, %p111
      %s113 = ssub.s32 %s25, %s37
      %s114 = ssub.s32 %s26, %s33
      %s115 = sor.u32 %s113, %s114
      %p116 = scmp.eq.s32.totalorder %s115, 0
      %s118 = sadd.s32 %s117, 1
      %s119 = scalar_select %p116, %s117, %s118
      %p122 = pneg %p116
      %p123 = scmp.eq.s32.totalorder %s18, 1
      %p124 = por %p122, %p123
      %p125 = scmp.ne.s32.totalorder %s117, %s120
      %p126 = scmp.eq.s32.totalorder %s18, 0
      %p127 = por %p125, %p126
      %p128 = scmp.ne.s32.totalorder %s117, %s120
      %p129 = scmp.eq.s32.totalorder %s23, 1
      %p130 = por %p128, %p129
      %p131 = scmp.ne.s32.totalorder %s120, %s121
      %p132 = scmp.eq.s32.totalorder %s23, 0
      %p133 = por %p131, %p132
      %p134 = scmp.ne.s32.totalorder %s120, %s121
      %p135 = scmp.eq.s32.totalorder %s24, 1
      %p136 = por %p134, %p135
      %p138 = scmp.ne.s32.totalorder %s121, %s137
      %p139 = scmp.eq.s32.totalorder %s24, 0
      %p140 = por %p138, %p139
      %p141 = scmp.le.s32.totalorder 1, %s18
      %p142 = scmp.lt.s32.totalorder %s18, 3
      %p143 = pnand %p141, %p142
      %p144 = pneg %p143
      // Predicated region
      $region9: #{tpu_custom_call.1} parent=5 // pred_check
        _
      $region10: #{tpu_custom_call.1} parent=5 // pred_check_branch
        %146 = sbr.rel (%p143) target = $region12
      $region11: #{tpu_custom_call.1} parent=5 // pred_region
        %s147 = ssub.s32 %s18, 1
        // Predicated region
        $region13: #{tpu_custom_call.1} parent=11 // pred_check
          %p148 = pneg %p105
        $region14: #{tpu_custom_call.1} parent=11 // pred_check_branch
          %150 = sbr.rel (%p148) target = $region16
        $region15: #{tpu_custom_call.1} parent=11 // pred_region
          %s152 = ssub.s32 256, 256
          %153 = vsyncadd [#allocation8], %s152
          %s154 = sshll.u32 [#allocation9], 4
          %s155 = int_to_ptr.vmem [resolvable:$true] %s154
          %160 = dma.hbm_to_vmem [thread:$0]  %s2, 256, %s155, [#allocation8], 64, 64, 4
        $region16: #{tpu_custom_call.1} parent=11 // pred_fallthru
          _
      $region12: #{tpu_custom_call.1} parent=5 // pred_fallthru
        _
      %p161 = scmp.lt.s32.totalorder %s18, 2
      // Predicated region
      $region17: #{tpu_custom_call.1} parent=5 // pred_check
        %p162 = pneg %p161
      $region18: #{tpu_custom_call.1} parent=5 // pred_check_branch
        %164 = sbr.rel (%p162) target = $region20
      $region19: #{tpu_custom_call.1} parent=5 // pred_region
        // Predicated region
        $region21: #{tpu_custom_call.1} parent=19 // pred_check
          %p165 = pneg %p50
        $region22: #{tpu_custom_call.1} parent=19 // pred_check_branch
          %167 = sbr.rel (%p165) target = $region24
        $region23: #{tpu_custom_call.1} parent=19 // pred_region
          %s168 = sand.u32 %s40, 1
          %s169 = scalar_lea.sflag [#allocation5], %s168
          %s170 = sand.u32 %s40, 1
          %s171 = smul.addr %s170, 8
          %s172 = scalar_lea.vmem [#allocation4], %s171
          %s174 = ssub.s32 128, 128
          %175 = vsyncadd %s169, %s174
          %s176 = smul.addr %s25, 128
          %s177 = scalar_lea.hbm %s0, %s176
          %s179 = sshll.u32 %s172, 4
          %s180 = int_to_ptr.vmem [resolvable:$true] %s179
          %182 = dma.hbm_to_vmem [thread:$0]  %s177, 128, %s180, %s169
        $region24: #{tpu_custom_call.1} parent=19 // pred_fallthru
          _
        // Predicated region
        $region25: #{tpu_custom_call.1} parent=19 // pred_check
          %p183 = pneg %p78
        $region26: #{tpu_custom_call.1} parent=19 // pred_check_branch
          %185 = sbr.rel (%p183) target = $region28
        $region27: #{tpu_custom_call.1} parent=19 // pred_region
          %s186 = sand.u32 %s18, 1
          %s187 = scalar_lea.sflag [#allocation8], %s186
          %s188 = sand.u32 %s68, 1
          %s189 = smul.addr %s188, 8
          %s190 = scalar_lea.vmem [#allocation7], %s189
          %s192 = ssub.s32 128, 128
          %193 = vsyncadd %s187, %s192
          %s194 = sadd.s32 %s26, %s25
          %s195 = smul.addr %s194, 128
          %s196 = scalar_lea.hbm %s1, %s195
          %s198 = sshll.u32 %s190, 4
          %s199 = int_to_ptr.vmem [resolvable:$true] %s198
          %201 = dma.hbm_to_vmem [thread:$0]  %s196, 128, %s199, %s187
        $region28: #{tpu_custom_call.1} parent=19 // pred_fallthru
          _
      $region20: #{tpu_custom_call.1} parent=5 // pred_fallthru
        _
      %p202 = scmp.le.s32.totalorder 1, %s18
      %p203 = scmp.lt.s32.totalorder %s18, 3
      %p204 = pnand %p202, %p203
      %p205 = pneg %p204
      // Predicated region
      $region29: #{tpu_custom_call.1} parent=5 // pred_check
        _
      $region30: #{tpu_custom_call.1} parent=5 // pred_check_branch
        %207 = sbr.rel (%p204) target = $region32
      $region31: #{tpu_custom_call.1} parent=5 // pred_region
        %s208 = ssub.s32 %s18, 1
        %s209 = sand.u32 %s43, 1
        %s210 = scalar_lea.sflag [#allocation5], %s209
        %s211 = sand.u32 %s43, 1
        %s212 = smul.addr %s211, 8
        %s213 = scalar_lea.vmem [#allocation4], %s212
        // Predicated region
        $region33: #{tpu_custom_call.1} parent=31 // pred_check
          %p214 = pneg %p56
        $region34: #{tpu_custom_call.1} parent=31 // pred_check_branch
          %216 = sbr.rel (%p214) target = $region36
        $region35: #{tpu_custom_call.1} parent=31 // pred_region
          %217 = dma.done %s210, 128
        $region36: #{tpu_custom_call.1} parent=31 // pred_fallthru
          _
        %s218 = sand.u32 %s23, 1
        %s219 = scalar_lea.sflag [#allocation8], %s218
        %s220 = sand.u32 %s71, 1
        %s221 = smul.addr %s220, 8
        %s222 = scalar_lea.vmem [#allocation7], %s221
        // Predicated region
        $region37: #{tpu_custom_call.1} parent=31 // pred_check
          %p223 = pneg %p84
        $region38: #{tpu_custom_call.1} parent=31 // pred_check_branch
          %225 = sbr.rel (%p223) target = $region40
        $region39: #{tpu_custom_call.1} parent=31 // pred_region
          %226 = dma.done %s219, 128
        $region40: #{tpu_custom_call.1} parent=31 // pred_fallthru
          _
        // Predicated region
        $region41: #{tpu_custom_call.1} parent=31 // pred_check
          %p227 = pneg %p105
        $region42: #{tpu_custom_call.1} parent=31 // pred_check_branch
          %229 = sbr.rel (%p227) target = $region44
        $region43: #{tpu_custom_call.1} parent=31 // pred_region
          %230 = dma.done [#allocation8], 256
        $region44: #{tpu_custom_call.1} parent=31 // pred_fallthru
          _
        %s231 = sand.u32 %s43, 1
        %s232 = scalar_lea.sflag [#allocation5], %s231
        %s233 = sand.u32 %s43, 1
        %s234 = smul.addr %s233, 8
        %s235 = scalar_lea.vmem [#allocation4], %s234
        %p236 = pneg %p56
        %p237 = pneg %p53
        %s238 = sand.u32 %s23, 1
        %s239 = scalar_lea.sflag [#allocation8], %s238
        %s240 = sand.u32 %s71, 1
        %s241 = smul.addr %s240, 8
        %s242 = scalar_lea.vmem [#allocation7], %s241
        %p243 = pneg %p84
        %p244 = pneg %p81
        %p245 = pneg %p105
        %p246 = pneg %p102
        %p247 = pneg %p133
        %p248 = pneg %p130
        %s249 = sand.u32 %s120, 1
        %s250 = scalar_lea.sflag [#allocation6], %s249
        %s251 = sand.u32 %s120, 1
        %s252 = smul.addr %s251, 8
        %s253 = scalar_lea.vmem [#allocation10], %s252
        %p255 = scmp.eq.s32.totalorder %s28, 0
        // Predicated region
        $region45: #{tpu_custom_call.1} parent=31 // pred_check
          %p256 = pneg %p255
        $region46: #{tpu_custom_call.1} parent=31 // pred_check_branch
          %258 = sbr.rel (%p256) target = $region48
        $region47: #{tpu_custom_call.1} parent=31 // pred_region
          %v259 = vld [vmem:[%s213] sm:$0xff]
          %v260 = vpack.c.bf16 %v259, %v259
          %v261 = vld [vmem:[#allocation9] sm:$0xf]
          %v262 = vld [vmem:[#allocation9 + $0x4] sm:$0xf]
          %v263 = vld [vmem:[#allocation9 + $0x8] sm:$0xf]
          %v264 = vld [vmem:[#allocation9 + $0xc] sm:$0xf]
          %v269 = vunpack.c.l.b16 %v261
          %v270 = vunpack.c.l.b16 %v262
          %v271 = vunpack.c.l.b16 %v263
          %v272 = vunpack.c.l.b16 %v264
          %v273 = vpack.c.b16 %v270, %v269
          %v274 = vpack.c.b16 %v272, %v271
          %vm277 = vcmask 261120
          %v279 = vsel %vm277, %v260, 0
          %281 = vmatprep.subr.bf16.mxu0 0
          %282 = vmatpush1.bf16.msra.mxu0 0
          %283 = vmatprep.subr.bf16.mxu0 0
          %284 = vmatpush1.bf16.msra.mxu0 0
          %285 = vmatprep.subr.bf16.mxu0 0
          %286 = vmatpush1.bf16.msra.mxu0 0
          %287 = vmatprep.subr.bf16.mxu0 0
          %288 = vmatpush1.bf16.msra.mxu0 0
          %289 = vmatprep.subr.bf16.mxu0 0
          %290 = vmatpush1.bf16.msra.mxu0 0
          %291 = vmatprep.subr.bf16.mxu0 0
          %292 = vmatpush1.bf16.msra.mxu0 0
          %293 = vmatprep.subr.bf16.mxu0 0
          %294 = vmatpush1.bf16.msra.mxu0 %v274
          %295 = vmatprep.subr.bf16.mxu0 0
          %296 = vmatpush1.bf16.msra.mxu0 %v273
          %297 = vmatprep.subr.bf16.mxu0 0
          %298 = vmatpush2.bf16.msra.mxu0 0
          %299 = vmatprep.subr.bf16.mxu0 0
          %300 = vmatpush2.bf16.msra.mxu0 0
          %301 = vmatprep.subr.bf16.mxu0 0
          %302 = vmatpush2.bf16.msra.mxu0 0
          %303 = vmatprep.subr.bf16.mxu0 0
          %304 = vmatpush2.bf16.msra.mxu0 0
          %305 = vmatprep.subr.bf16.mxu0 0
          %306 = vmatpush2.bf16.msra.mxu0 0
          %307 = vmatprep.subr.bf16.mxu0 0
          %308 = vmatpush2.bf16.msra.mxu0 0
          %309 = vmatprep.subr.bf16.mxu0 0
          %310 = vmatpush2.bf16.msra.mxu0 0
          %311 = vmatprep.subr.bf16.mxu0 0
          %312 = vmatpush2.bf16.msra.mxu0 0
          %313 = vmatprep.mubr.bf16.mxu0 0
          %314 = vmatmul.mubr.bf16.gmra.mxu0 %v279
          %v315 = vpop.f32.mrf.mxu0
          %v316 = vadd.f32 0.0, %v315
          %v317 = vpop.f32.mrf.mxu0
          %v318 = vpop.f32.mrf.mxu0
          %v319 = vpop.f32.mrf.mxu0
          %320 = vdwg.mxu0
          %v321 = vpack.c.bf16 %v316, %v316
          %vm322 = vcmask 781312
          %323 = vst.msk [vmem:[#allocation2] sm:$0xf] %vm322, %v321
        $region48: #{tpu_custom_call.1} parent=31 // pred_fallthru
          _
        %v324 = vld [vmem:[#allocation2] sm:$0xf]
        %v325 = vld [vmem:[%s222] sm:$0xff]
        %v326 = vmul.f32 %v325, -10000.0
        %v328 = vunpack.c.l.b16 %v324
        %v329 = vpack.c.b16 %v328, %v328
        %330 = vrot.lane.b32.xlu0 %v329, 96
        %v331 = vpop.permute.xlu0 %330
        %vm332 = vcmask 64512
        %v334 = vsel %vm332, %v324, 0
        %v337 = vsel %vm332, %v331, 0
        %339 = vmatprep.subr.bf16.mxu0 0
        %340 = vmatpush1.bf16.xpose.msra.mxu0 0
        %341 = vmatprep.subr.bf16.mxu0 0
        %342 = vmatpush1.bf16.xpose.msra.mxu0 0
        %343 = vmatprep.subr.bf16.mxu0 0
        %344 = vmatpush1.bf16.xpose.msra.mxu0 0
        %345 = vmatprep.subr.bf16.mxu0 0
        %346 = vmatpush1.bf16.xpose.msra.mxu0 0
        %347 = vmatprep.subr.bf16.mxu0 0
        %348 = vmatpush1.bf16.xpose.msra.mxu0 0
        %349 = vmatprep.subr.bf16.mxu0 0
        %350 = vmatpush1.bf16.xpose.msra.mxu0 0
        %351 = vmatprep.subr.bf16.mxu0 0
        %352 = vmatpush1.bf16.xpose.msra.mxu0 0
        %353 = vmatprep.subr.bf16.mxu0 0
        %354 = vmatpush1.bf16.xpose.msra.mxu0 %v337
        %355 = vmatprep.subr.bf16.mxu0 0
        %356 = vmatpush2.bf16.xpose.msra.mxu0 0
        %357 = vmatprep.subr.bf16.mxu0 0
        %358 = vmatpush2.bf16.xpose.msra.mxu0 0
        %359 = vmatprep.subr.bf16.mxu0 0
        %360 = vmatpush2.bf16.xpose.msra.mxu0 0
        %361 = vmatprep.subr.bf16.mxu0 0
        %362 = vmatpush2.bf16.xpose.msra.mxu0 0
        %363 = vmatprep.subr.bf16.mxu0 0
        %364 = vmatpush2.bf16.xpose.msra.mxu0 0
        %365 = vmatprep.subr.bf16.mxu0 0
        %366 = vmatpush2.bf16.xpose.msra.mxu0 0
        %367 = vmatprep.subr.bf16.mxu0 0
        %368 = vmatpush2.bf16.xpose.msra.mxu0 0
        %369 = vmatprep.subr.bf16.mxu0 0
        %370 = vmatpush2.bf16.xpose.msra.mxu0 0
        %371 = vmatprep.mubr.bf16.mxu0 0
        %372 = vmatmul.mubr.bf16.gmra.mxu0 %v334
        %v373 = vpop.f32.mrf.mxu0
        %v374 = vadd.f32 %v326, %v373
        %v375 = vpop.f32.mrf.mxu0
        %v376 = vpop.f32.mrf.mxu0
        %v377 = vpop.f32.mrf.mxu0
        %378 = vdwg.mxu0
        %v379 = vsel %vm332, %v374, -inf
        %380 = vmax.xlane.f32.xlu0 %v379
        %v381 = vpop.xlane.xlu0 %380
        %v382 = vsub.f32 %v374, %v381
        %v383 = vmul.f32 %v382, 1.442695
        %v384 = vpow.pop %v383
        %v385 = vsel %vm332, %v384, 0.0
        %386 = vadd.xlane.f32.xlu0 %v385
        %v387 = vpop.xlane.xlu0 %386
        %v388 = vrcp.pop %v387
        %v389 = vmul.f32 %v384, %v388
        %v390 = vpack.c.bf16 %v389, %v389
        %391 = vrot.lane.b32.xlu0 %v329, 64
        %v392 = vpop.permute.xlu0 %391
        %v394 = vsel %vm332, %v390, 0
        %vm396 = vcmask 1043456
        %v398 = vsel %vm396, %v392, 0
        %400 = vmatprep.subr.bf16.mxu0 0
        %401 = vmatpush1.bf16.msra.mxu0 0
        %402 = vmatprep.subr.bf16.mxu0 0
        %403 = vmatpush1.bf16.msra.mxu0 0
        %404 = vmatprep.subr.bf16.mxu0 0
        %405 = vmatpush1.bf16.msra.mxu0 0
        %406 = vmatprep.subr.bf16.mxu0 0
        %407 = vmatpush1.bf16.msra.mxu0 0
        %408 = vmatprep.subr.bf16.mxu0 0
        %409 = vmatpush1.bf16.msra.mxu0 0
        %410 = vmatprep.subr.bf16.mxu0 0
        %411 = vmatpush1.bf16.msra.mxu0 0
        %412 = vmatprep.subr.bf16.mxu0 0
        %413 = vmatpush1.bf16.msra.mxu0 0
        %414 = vmatprep.subr.bf16.mxu0 0
        %415 = vmatpush1.bf16.msra.mxu0 %v398
        %416 = vmatprep.subr.bf16.mxu0 0
        %417 = vmatpush2.bf16.msra.mxu0 0
        %418 = vmatprep.subr.bf16.mxu0 0
        %419 = vmatpush2.bf16.msra.mxu0 0
        %420 = vmatprep.subr.bf16.mxu0 0
        %421 = vmatpush2.bf16.msra.mxu0 0
        %422 = vmatprep.subr.bf16.mxu0 0
        %423 = vmatpush2.bf16.msra.mxu0 0
        %424 = vmatprep.subr.bf16.mxu0 0
        %425 = vmatpush2.bf16.msra.mxu0 0
        %426 = vmatprep.subr.bf16.mxu0 0
        %427 = vmatpush2.bf16.msra.mxu0 0
        %428 = vmatprep.subr.bf16.mxu0 0
        %429 = vmatpush2.bf16.msra.mxu0 0
        %430 = vmatprep.subr.bf16.mxu0 0
        %431 = vmatpush2.bf16.msra.mxu0 0
        %432 = vmatprep.mubr.bf16.mxu0 0
        %433 = vmatmul.mubr.bf16.gmra.mxu0 %v394
        %v434 = vpop.f32.mrf.mxu0
        %v435 = vadd.f32 0.0, %v434
        %v436 = vpop.f32.mrf.mxu0
        %v437 = vpop.f32.mrf.mxu0
        %v438 = vpop.f32.mrf.mxu0
        %439 = vdwg.mxu0
        %440 = vst.msk [vmem:[#allocation3] sm:$0xff] %vm332, %v435
        %441 = vrot.lane.b32.xlu0 %v329, 120
        %v442 = vpop.permute.xlu0 %441
        %443 = vrot.lane.b32.xlu0 %v329, 88
        %v444 = vpop.permute.xlu0 %443
        %v446 = vsel %vm332, %v442, 0
        %v449 = vsel %vm332, %v444, 0
        %451 = vmatprep.subr.bf16.mxu0 0
        %452 = vmatpush1.bf16.xpose.msra.mxu0 0
        %453 = vmatprep.subr.bf16.mxu0 0
        %454 = vmatpush1.bf16.xpose.msra.mxu0 0
        %455 = vmatprep.subr.bf16.mxu0 0
        %456 = vmatpush1.bf16.xpose.msra.mxu0 0
        %457 = vmatprep.subr.bf16.mxu0 0
        %458 = vmatpush1.bf16.xpose.msra.mxu0 0
        %459 = vmatprep.subr.bf16.mxu0 0
        %460 = vmatpush1.bf16.xpose.msra.mxu0 0
        %461 = vmatprep.subr.bf16.mxu0 0
        %462 = vmatpush1.bf16.xpose.msra.mxu0 0
        %463 = vmatprep.subr.bf16.mxu0 0
        %464 = vmatpush1.bf16.xpose.msra.mxu0 0
        %465 = vmatprep.subr.bf16.mxu0 0
        %466 = vmatpush1.bf16.xpose.msra.mxu0 %v449
        %467 = vmatprep.subr.bf16.mxu0 0
        %468 = vmatpush2.bf16.xpose.msra.mxu0 0
        %469 = vmatprep.subr.bf16.mxu0 0
        %470 = vmatpush2.bf16.xpose.msra.mxu0 0
        %471 = vmatprep.subr.bf16.mxu0 0
        %472 = vmatpush2.bf16.xpose.msra.mxu0 0
        %473 = vmatprep.subr.bf16.mxu0 0
        %474 = vmatpush2.bf16.xpose.msra.mxu0 0
        %475 = vmatprep.subr.bf16.mxu0 0
        %476 = vmatpush2.bf16.xpose.msra.mxu0 0
        %477 = vmatprep.subr.bf16.mxu0 0
        %478 = vmatpush2.bf16.xpose.msra.mxu0 0
        %479 = vmatprep.subr.bf16.mxu0 0
        %480 = vmatpush2.bf16.xpose.msra.mxu0 0
        %481 = vmatprep.subr.bf16.mxu0 0
        %482 = vmatpush2.bf16.xpose.msra.mxu0 0
        %483 = vmatprep.mubr.bf16.mxu0 0
        %484 = vmatmul.mubr.bf16.gmra.mxu0 %v446
        %v485 = vpop.f32.mrf.mxu0
        %v486 = vadd.f32 %v326, %v485
        %v487 = vpop.f32.mrf.mxu0
        %v488 = vpop.f32.mrf.mxu0
        %v489 = vpop.f32.mrf.mxu0
        %490 = vdwg.mxu0
        %v491 = vsel %vm332, %v486, -inf
        %492 = vmax.xlane.f32.xlu0 %v491
        %v493 = vpop.xlane.xlu0 %492
        %v494 = vsub.f32 %v486, %v493
        %v495 = vmul.f32 %v494, 1.442695
        %v496 = vpow.pop %v495
        %v497 = vsel %vm332, %v496, 0.0
        %498 = vadd.xlane.f32.xlu0 %v497
        %v499 = vpop.xlane.xlu0 %498
        %v500 = vrcp.pop %v499
        %v501 = vmul.f32 %v496, %v500
        %v502 = vpack.c.bf16 %v501, %v501
        %503 = vrot.lane.b32.xlu0 %v329, 56
        %v504 = vpop.permute.xlu0 %503
        %v506 = vsel %vm332, %v502, 0
        %v509 = vsel %vm396, %v504, 0
        %511 = vmatprep.subr.bf16.mxu0 0
        %512 = vmatpush1.bf16.msra.mxu0 0
        %513 = vmatprep.subr.bf16.mxu0 0
        %514 = vmatpush1.bf16.msra.mxu0 0
        %515 = vmatprep.subr.bf16.mxu0 0
        %516 = vmatpush1.bf16.msra.mxu0 0
        %517 = vmatprep.subr.bf16.mxu0 0
        %518 = vmatpush1.bf16.msra.mxu0 0
        %519 = vmatprep.subr.bf16.mxu0 0
        %520 = vmatpush1.bf16.msra.mxu0 0
        %521 = vmatprep.subr.bf16.mxu0 0
        %522 = vmatpush1.bf16.msra.mxu0 0
        %523 = vmatprep.subr.bf16.mxu0 0
        %524 = vmatpush1.bf16.msra.mxu0 0
        %525 = vmatprep.subr.bf16.mxu0 0
        %526 = vmatpush1.bf16.msra.mxu0 %v509
        %527 = vmatprep.subr.bf16.mxu0 0
        %528 = vmatpush2.bf16.msra.mxu0 0
        %529 = vmatprep.subr.bf16.mxu0 0
        %530 = vmatpush2.bf16.msra.mxu0 0
        %531 = vmatprep.subr.bf16.mxu0 0
        %532 = vmatpush2.bf16.msra.mxu0 0
        %533 = vmatprep.subr.bf16.mxu0 0
        %534 = vmatpush2.bf16.msra.mxu0 0
        %535 = vmatprep.subr.bf16.mxu0 0
        %536 = vmatpush2.bf16.msra.mxu0 0
        %537 = vmatprep.subr.bf16.mxu0 0
        %538 = vmatpush2.bf16.msra.mxu0 0
        %539 = vmatprep.subr.bf16.mxu0 0
        %540 = vmatpush2.bf16.msra.mxu0 0
        %541 = vmatprep.subr.bf16.mxu0 0
        %542 = vmatpush2.bf16.msra.mxu0 0
        %543 = vmatprep.mubr.bf16.mxu0 0
        %544 = vmatmul.mubr.bf16.gmra.mxu0 %v506
        %v545 = vpop.f32.mrf.mxu0
        %v546 = vadd.f32 0.0, %v545
        %v547 = vpop.f32.mrf.mxu0
        %v548 = vpop.f32.mrf.mxu0
        %v549 = vpop.f32.mrf.mxu0
        %550 = vdwg.mxu0
        %552 = vrot.lane.b32.xlu0 %v546, 8
        %v553 = vpop.permute.xlu0 %552
        %vm555 = vcmask 130112
        %556 = vst.msk [vmem:[#allocation3] sm:$0xff] %vm555, %v553
        %557 = vrot.lane.b32.xlu0 %v329, 112
        %v558 = vpop.permute.xlu0 %557
        %559 = vrot.lane.b32.xlu0 %v329, 80
        %v560 = vpop.permute.xlu0 %559
        %v562 = vsel %vm332, %v558, 0
        %v565 = vsel %vm332, %v560, 0
        %567 = vmatprep.subr.bf16.mxu0 0
        %568 = vmatpush1.bf16.xpose.msra.mxu0 0
        %569 = vmatprep.subr.bf16.mxu0 0
        %570 = vmatpush1.bf16.xpose.msra.mxu0 0
        %571 = vmatprep.subr.bf16.mxu0 0
        %572 = vmatpush1.bf16.xpose.msra.mxu0 0
        %573 = vmatprep.subr.bf16.mxu0 0
        %574 = vmatpush1.bf16.xpose.msra.mxu0 0
        %575 = vmatprep.subr.bf16.mxu0 0
        %576 = vmatpush1.bf16.xpose.msra.mxu0 0
        %577 = vmatprep.subr.bf16.mxu0 0
        %578 = vmatpush1.bf16.xpose.msra.mxu0 0
        %579 = vmatprep.subr.bf16.mxu0 0
        %580 = vmatpush1.bf16.xpose.msra.mxu0 0
        %581 = vmatprep.subr.bf16.mxu0 0
        %582 = vmatpush1.bf16.xpose.msra.mxu0 %v565
        %583 = vmatprep.subr.bf16.mxu0 0
        %584 = vmatpush2.bf16.xpose.msra.mxu0 0
        %585 = vmatprep.subr.bf16.mxu0 0
        %586 = vmatpush2.bf16.xpose.msra.mxu0 0
        %587 = vmatprep.subr.bf16.mxu0 0
        %588 = vmatpush2.bf16.xpose.msra.mxu0 0
        %589 = vmatprep.subr.bf16.mxu0 0
        %590 = vmatpush2.bf16.xpose.msra.mxu0 0
        %591 = vmatprep.subr.bf16.mxu0 0
        %592 = vmatpush2.bf16.xpose.msra.mxu0 0
        %593 = vmatprep.subr.bf16.mxu0 0
        %594 = vmatpush2.bf16.xpose.msra.mxu0 0
        %595 = vmatprep.subr.bf16.mxu0 0
        %596 = vmatpush2.bf16.xpose.msra.mxu0 0
        %597 = vmatprep.subr.bf16.mxu0 0
        %598 = vmatpush2.bf16.xpose.msra.mxu0 0
        %599 = vmatprep.mubr.bf16.mxu0 0
        %600 = vmatmul.mubr.bf16.gmra.mxu0 %v562
        %v601 = vpop.f32.mrf.mxu0
        %v602 = vadd.f32 %v326, %v601
        %v603 = vpop.f32.mrf.mxu0
        %v604 = vpop.f32.mrf.mxu0
        %v605 = vpop.f32.mrf.mxu0
        %606 = vdwg.mxu0
        %v607 = vsel %vm332, %v602, -inf
        %608 = vmax.xlane.f32.xlu0 %v607
        %v609 = vpop.xlane.xlu0 %608
        %v610 = vsub.f32 %v602, %v609
        %v611 = vmul.f32 %v610, 1.442695
        %v612 = vpow.pop %v611
        %v613 = vsel %vm332, %v612, 0.0
        %614 = vadd.xlane.f32.xlu0 %v613
        %v615 = vpop.xlane.xlu0 %614
        %v616 = vrcp.pop %v615
        %v617 = vmul.f32 %v612, %v616
        %v618 = vpack.c.bf16 %v617, %v617
        %619 = vrot.lane.b32.xlu0 %v329, 48
        %v620 = vpop.permute.xlu0 %619
        %v622 = vsel %vm332, %v618, 0
        %v625 = vsel %vm396, %v620, 0
        %627 = vmatprep.subr.bf16.mxu0 0
        %628 = vmatpush1.bf16.msra.mxu0 0
        %629 = vmatprep.subr.bf16.mxu0 0
        %630 = vmatpush1.bf16.msra.mxu0 0
        %631 = vmatprep.subr.bf16.mxu0 0
        %632 = vmatpush1.bf16.msra.mxu0 0
        %633 = vmatprep.subr.bf16.mxu0 0
        %634 = vmatpush1.bf16.msra.mxu0 0
        %635 = vmatprep.subr.bf16.mxu0 0
        %636 = vmatpush1.bf16.msra.mxu0 0
        %637 = vmatprep.subr.bf16.mxu0 0
        %638 = vmatpush1.bf16.msra.mxu0 0
        %639 = vmatprep.subr.bf16.mxu0 0
        %640 = vmatpush1.bf16.msra.mxu0 0
        %641 = vmatprep.subr.bf16.mxu0 0
        %642 = vmatpush1.bf16.msra.mxu0 %v625
        %643 = vmatprep.subr.bf16.mxu0 0
        %644 = vmatpush2.bf16.msra.mxu0 0
        %645 = vmatprep.subr.bf16.mxu0 0
        %646 = vmatpush2.bf16.msra.mxu0 0
        %647 = vmatprep.subr.bf16.mxu0 0
        %648 = vmatpush2.bf16.msra.mxu0 0
        %649 = vmatprep.subr.bf16.mxu0 0
        %650 = vmatpush2.bf16.msra.mxu0 0
        %651 = vmatprep.subr.bf16.mxu0 0
        %652 = vmatpush2.bf16.msra.mxu0 0
        %653 = vmatprep.subr.bf16.mxu0 0
        %654 = vmatpush2.bf16.msra.mxu0 0
        %655 = vmatprep.subr.bf16.mxu0 0
        %656 = vmatpush2.bf16.msra.mxu0 0
        %657 = vmatprep.subr.bf16.mxu0 0
        %658 = vmatpush2.bf16.msra.mxu0 0
        %659 = vmatprep.mubr.bf16.mxu0 0
        %660 = vmatmul.mubr.bf16.gmra.mxu0 %v622
        %v661 = vpop.f32.mrf.mxu0
        %v662 = vadd.f32 0.0, %v661
        %v663 = vpop.f32.mrf.mxu0
        %v664 = vpop.f32.mrf.mxu0
        %v665 = vpop.f32.mrf.mxu0
        %666 = vdwg.mxu0
        %668 = vrot.lane.b32.xlu0 %v662, 16
        %v669 = vpop.permute.xlu0 %668
        %vm671 = vcmask 195712
        %672 = vst.msk [vmem:[#allocation3] sm:$0xff] %vm671, %v669
        %673 = vrot.lane.b32.xlu0 %v329, 104
        %v674 = vpop.permute.xlu0 %673
        %675 = vrot.lane.b32.xlu0 %v329, 72
        %v676 = vpop.permute.xlu0 %675
        %v678 = vsel %vm332, %v674, 0
        %v681 = vsel %vm332, %v676, 0
        %683 = vmatprep.subr.bf16.mxu0 0
        %684 = vmatpush1.bf16.xpose.msra.mxu0 0
        %685 = vmatprep.subr.bf16.mxu0 0
        %686 = vmatpush1.bf16.xpose.msra.mxu0 0
        %687 = vmatprep.subr.bf16.mxu0 0
        %688 = vmatpush1.bf16.xpose.msra.mxu0 0
        %689 = vmatprep.subr.bf16.mxu0 0
        %690 = vmatpush1.bf16.xpose.msra.mxu0 0
        %691 = vmatprep.subr.bf16.mxu0 0
        %692 = vmatpush1.bf16.xpose.msra.mxu0 0
        %693 = vmatprep.subr.bf16.mxu0 0
        %694 = vmatpush1.bf16.xpose.msra.mxu0 0
        %695 = vmatprep.subr.bf16.mxu0 0
        %696 = vmatpush1.bf16.xpose.msra.mxu0 0
        %697 = vmatprep.subr.bf16.mxu0 0
        %698 = vmatpush1.bf16.xpose.msra.mxu0 %v681
        %699 = vmatprep.subr.bf16.mxu0 0
        %700 = vmatpush2.bf16.xpose.msra.mxu0 0
        %701 = vmatprep.subr.bf16.mxu0 0
        %702 = vmatpush2.bf16.xpose.msra.mxu0 0
        %703 = vmatprep.subr.bf16.mxu0 0
        %704 = vmatpush2.bf16.xpose.msra.mxu0 0
        %705 = vmatprep.subr.bf16.mxu0 0
        %706 = vmatpush2.bf16.xpose.msra.mxu0 0
        %707 = vmatprep.subr.bf16.mxu0 0
        %708 = vmatpush2.bf16.xpose.msra.mxu0 0
        %709 = vmatprep.subr.bf16.mxu0 0
        %710 = vmatpush2.bf16.xpose.msra.mxu0 0
        %711 = vmatprep.subr.bf16.mxu0 0
        %712 = vmatpush2.bf16.xpose.msra.mxu0 0
        %713 = vmatprep.subr.bf16.mxu0 0
        %714 = vmatpush2.bf16.xpose.msra.mxu0 0
        %715 = vmatprep.mubr.bf16.mxu0 0
        %716 = vmatmul.mubr.bf16.gmra.mxu0 %v678
        %v717 = vpop.f32.mrf.mxu0
        %v718 = vadd.f32 %v326, %v717
        %v719 = vpop.f32.mrf.mxu0
        %v720 = vpop.f32.mrf.mxu0
        %v721 = vpop.f32.mrf.mxu0
        %722 = vdwg.mxu0
        %v723 = vsel %vm332, %v718, -inf
        %724 = vmax.xlane.f32.xlu0 %v723
        %v725 = vpop.xlane.xlu0 %724
        %v726 = vsub.f32 %v718, %v725
        %v727 = vmul.f32 %v726, 1.442695
        %v728 = vpow.pop %v727
        %v729 = vsel %vm332, %v728, 0.0
        %730 = vadd.xlane.f32.xlu0 %v729
        %v731 = vpop.xlane.xlu0 %730
        %v732 = vrcp.pop %v731
        %v733 = vmul.f32 %v728, %v732
        %v734 = vpack.c.bf16 %v733, %v733
        %735 = vrot.lane.b32.xlu0 %v329, 40
        %v736 = vpop.permute.xlu0 %735
        %v738 = vsel %vm332, %v734, 0
        %v741 = vsel %vm396, %v736, 0
        %743 = vmatprep.subr.bf16.mxu0 0
        %744 = vmatpush1.bf16.msra.mxu0 0
        %745 = vmatprep.subr.bf16.mxu0 0
        %746 = vmatpush1.bf16.msra.mxu0 0
        %747 = vmatprep.subr.bf16.mxu0 0
        %748 = vmatpush1.bf16.msra.mxu0 0
        %749 = vmatprep.subr.bf16.mxu0 0
        %750 = vmatpush1.bf16.msra.mxu0 0
        %751 = vmatprep.subr.bf16.mxu0 0
        %752 = vmatpush1.bf16.msra.mxu0 0
        %753 = vmatprep.subr.bf16.mxu0 0
        %754 = vmatpush1.bf16.msra.mxu0 0
        %755 = vmatprep.subr.bf16.mxu0 0
        %756 = vmatpush1.bf16.msra.mxu0 0
        %757 = vmatprep.subr.bf16.mxu0 0
        %758 = vmatpush1.bf16.msra.mxu0 %v741
        %759 = vmatprep.subr.bf16.mxu0 0
        %760 = vmatpush2.bf16.msra.mxu0 0
        %761 = vmatprep.subr.bf16.mxu0 0
        %762 = vmatpush2.bf16.msra.mxu0 0
        %763 = vmatprep.subr.bf16.mxu0 0
        %764 = vmatpush2.bf16.msra.mxu0 0
        %765 = vmatprep.subr.bf16.mxu0 0
        %766 = vmatpush2.bf16.msra.mxu0 0
        %767 = vmatprep.subr.bf16.mxu0 0
        %768 = vmatpush2.bf16.msra.mxu0 0
        %769 = vmatprep.subr.bf16.mxu0 0
        %770 = vmatpush2.bf16.msra.mxu0 0
        %771 = vmatprep.subr.bf16.mxu0 0
        %772 = vmatpush2.bf16.msra.mxu0 0
        %773 = vmatprep.subr.bf16.mxu0 0
        %774 = vmatpush2.bf16.msra.mxu0 0
        %775 = vmatprep.mubr.bf16.mxu0 0
        %776 = vmatmul.mubr.bf16.gmra.mxu0 %v738
        %v777 = vpop.f32.mrf.mxu0
        %v778 = vadd.f32 0.0, %v777
        %v779 = vpop.f32.mrf.mxu0
        %v780 = vpop.f32.mrf.mxu0
        %v781 = vpop.f32.mrf.mxu0
        %782 = vdwg.mxu0
        %784 = vrot.lane.b32.xlu0 %v778, 24
        %v785 = vpop.permute.xlu0 %784
        %vm787 = vcmask 261312
        %788 = vst.msk [vmem:[#allocation3] sm:$0xff] %vm787, %v785
        %v789 = vld [vmem:[#allocation3] sm:$0xff]
        %vm790 = vcmask 261120
        %791 = vst.msk [vmem:[%s253] sm:$0xff] %vm790, %v789
        %s792 = sand.u32 %s120, 1
        %s793 = scalar_lea.sflag [#allocation6], %s792
        %s794 = sand.u32 %s120, 1
        %s795 = smul.addr %s794, 8
        %s796 = scalar_lea.vmem [#allocation10], %s795
        // Predicated region
        $region49: #{tpu_custom_call.1} parent=31 // pred_check
          %p797 = pneg %p130
        $region50: #{tpu_custom_call.1} parent=31 // pred_check_branch
          %799 = sbr.rel (%p797) target = $region52
        $region51: #{tpu_custom_call.1} parent=31 // pred_region
          %s801 = ssub.s32 128, 128
          %802 = vsyncadd %s793, %s801
          %s803 = sadd.s32 %s28, %s27
          %s804 = smul.addr %s803, 128
          %s805 = scalar_lea.hbm %s3, %s804
          %s807 = sshll.u32 %s796, 4
          %s808 = int_to_ptr.vmem [resolvable:$true] %s807
          %810 = dma.vmem_to_hbm [thread:$0]  %s808, 128, %s805, %s793
        $region52: #{tpu_custom_call.1} parent=31 // pred_fallthru
          _
      $region32: #{tpu_custom_call.1} parent=5 // pred_fallthru
        _
      %p811 = scmp.le.s32.totalorder 2, %s18
      // Predicated region
      $region53: #{tpu_custom_call.1} parent=5 // pred_check
        %p812 = pneg %p811
      $region54: #{tpu_custom_call.1} parent=5 // pred_check_branch
        %814 = sbr.rel (%p812) target = $region56
      $region55: #{tpu_custom_call.1} parent=5 // pred_region
        %s815 = ssub.s32 %s18, 2
        // Predicated region
        $region57: #{tpu_custom_call.1} parent=55 // pred_check
          %p816 = pneg %p136
        $region58: #{tpu_custom_call.1} parent=55 // pred_check_branch
          %818 = sbr.rel (%p816) target = $region60
        $region59: #{tpu_custom_call.1} parent=55 // pred_region
          %s819 = sand.u32 %s121, 1
          %s820 = scalar_lea.sflag [#allocation6], %s819
          %s821 = sand.u32 %s121, 1
          %s822 = smul.addr %s821, 8
          %s823 = scalar_lea.vmem [#allocation10], %s822
          %824 = dma.done %s820, 128
        $region60: #{tpu_custom_call.1} parent=55 // pred_fallthru
          _
      $region56: #{tpu_custom_call.1} parent=5 // pred_fallthru
        _
    $region6: #{tpu_custom_call.1} parent=1 // loop_footer
      %s22 = sadd.s32 1, %s18
    $region7: #{tpu_custom_call.1} parent=1 // loop_footer_branch
      %17 = sbr.rel target = $region3
    $region8: #{tpu_custom_call.1} parent=1 // loop_exit
      _
    %825 = vsyncpa [#allocation5], 1
    %s826 = scalar_lea.sflag [#allocation5], 1
    %827 = vsyncpa %s826, 1
    %828 = vsyncpa [#allocation8], 1
    %s829 = scalar_lea.sflag [#allocation8], 1
    %830 = vsyncpa %s829, 1
    %831 = vsyncpa [#allocation6], 1
    %s832 = scalar_lea.sflag [#allocation6], 1
    %833 = vsyncpa %s832, 1

</llo_original>
